<compile_context>
chip_gen: v6e
topology: v6e:2x2x1
jax: 0.10.0
libtpu: 0.0.40
codegen_flags: <defaults>
</compile_context>

<pallas_src>
import functools

import jax
import jax.numpy as jnp
from jax import lax
from jax.experimental import pallas as pl
from jax.experimental.pallas import tpu as pltpu


def _round_up(x: int, m: int) -> int:
    return ((x + m - 1) // m) * m


def ngram_kernel(x_ref, cw1_ref, b1_ref, w2_ref, b2_ref, out_ref, *, n_vocab):
    # x_ref:   (TB, block_size)  int32   token indices
    # cw1_ref: (KP, HP)          bf16    fused gather+L1 weight (zero-padded rows/cols)
    # b1_ref:  (1, HP)           f32
    # w2_ref:  (HP, NP)          bf16    W2.T zero-padded
    # b2_ref:  (1, NP)           f32
    # out_ref: (TB, NP)          f32     logits (lane-dense; sliced outside)
    tb, block_size = x_ref.shape
    kp, _ = cw1_ref.shape

    x = x_ref[...]                                          # (TB, block_size) int32

    # One lane iota for the whole one-hot (hoisted — built exactly once).
    lane = lax.broadcasted_iota(jnp.int32, (tb, kp), 1)     # (TB, KP)
    tok = jnp.full((tb, kp), -1, jnp.int32)                 # never matches in pad lanes
    voc = jnp.full((tb, kp), -2, jnp.int32)
    for t in range(block_size):                             # static unroll, block_size tiny
        lo = t * n_vocab
        in_blk = (lane >= lo) & (lane < lo + n_vocab)
        tok = jnp.where(in_blk, x[:, t:t + 1], tok)         # broadcast token of position t
        voc = jnp.where(in_blk, lane - lo, voc)             # local vocab index within block t
    onehot = (tok == voc).astype(jnp.bfloat16)              # (TB, KP): block_size ones per row

    # Stage 1: fused embedding-gather + L1 — a single K=KP(>=128) MXU matmul.
    hidden = jnp.dot(onehot, cw1_ref[...], preferred_element_type=jnp.float32)  # (TB, HP) f32
    h = hidden + b1_ref[...]                                 # f32 bias (no activation in forward)

    # Stage 2: L2.
    logits = jnp.dot(h.astype(jnp.bfloat16), w2_ref[...],
                     preferred_element_type=jnp.float32)
    out_ref[...] = logits + b2_ref[...]


def prepare_params(C, W1, b1, W2, b2, block_size):
    """One-time parameter repack: fuse C into W1 per position, transpose, zero-pad to
    lane/sublane-friendly sizes, cast matmul operands to bf16 (biases stay f32)."""
    n_vocab, d_embed = C.shape
    n_hidden = W1.shape[0]

    HP = _round_up(n_hidden, 128)             # lane-dense hidden dim
    NP = _round_up(n_vocab, 128)              # lane-dense output dim
    K = block_size * n_vocab
    KP = _round_up(K, 128)                    # lane-dense one-hot / contraction dim

    # CW1[t*V + v, h] = sum_j C[v, j] * W1[h, t*d_embed + j]   (f32, then one bf16 cast)
    w1_t = W1.astype(jnp.float32).T.reshape(block_size, d_embed, n_hidden)   # [t, j, h]
    cw1 = jnp.einsum("vj,tjh->tvh", C.astype(jnp.float32), w1_t)             # (bs, V, H)
    cw1 = cw1.reshape(K, n_hidden)
    cw1_p = jnp.zeros((KP, HP), jnp.bfloat16).at[:K, :n_hidden].set(cw1.astype(jnp.bfloat16))

    b1_p = jnp.zeros((1, HP), jnp.float32).at[0, :n_hidden].set(b1.astype(jnp.float32))

    w2_p = jnp.zeros((HP, NP), jnp.bfloat16).at[:n_hidden, :n_vocab].set(W2.T.astype(jnp.bfloat16))
    b2_p = jnp.zeros((1, NP), jnp.float32).at[0, :n_vocab].set(b2.astype(jnp.float32))

    dims = dict(n_vocab=n_vocab, d_embed=d_embed, block_size=block_size,
                n_hidden=n_hidden, KP=KP, HP=HP, NP=NP)
    return dict(cw1=cw1_p, b1=b1_p, w2=w2_p, b2=b2_p, dims=dims)


def ngram_forward(X, params):
    d = params["dims"]
    n_vocab, block_size = d["n_vocab"], d["block_size"]
    KP, HP, NP = d["KP"], d["HP"], d["NP"]
    B = X.shape[0]

    # Batch tiling: target 512-row tiles (amortizes grid-step overhead), but keep at
    # least 2 grid steps when B >= 16 so v7x megacore shards the "parallel" batch axis.
    grid_target = max(2, pl.cdiv(B, 512))
    TB = max(8, _round_up(pl.cdiv(B, grid_target), 8))
    grid_b = pl.cdiv(B, TB)
    B_pad = grid_b * TB

    x = X.astype(jnp.int32)
    if B_pad != B:
        x = jnp.pad(x, ((0, B_pad - B), (0, 0)))   # pad rows use token 0 (valid); sliced off below

    flops = 2 * B_pad * (KP * HP + HP * NP)
    bytes_accessed = (B_pad * block_size * 4 + KP * HP * 2 + HP * 4
                      + HP * NP * 2 + NP * 4 + B_pad * NP * 4)

    kernel = functools.partial(ngram_kernel, n_vocab=n_vocab)

    out = pl.pallas_call(
        kernel,
        out_shape=jax.ShapeDtypeStruct((B_pad, NP), jnp.float32),
        grid=(grid_b,),
        in_specs=[
            pl.BlockSpec((TB, block_size), lambda i: (i, 0)),   # X tile
            pl.BlockSpec((KP, HP), lambda i: (0, 0)),           # fused C@W1 (resident)
            pl.BlockSpec((1, HP), lambda i: (0, 0)),            # b1
            pl.BlockSpec((HP, NP), lambda i: (0, 0)),           # W2.T (resident)
            pl.BlockSpec((1, NP), lambda i: (0, 0)),            # b2
        ],
        out_specs=pl.BlockSpec((TB, NP), lambda i: (i, 0)),
        compiler_params=pltpu.CompilerParams(
            dimension_semantics=("parallel",)),
        cost_estimate=pl.CostEstimate(flops=flops, transcendentals=0,
                                      bytes_accessed=bytes_accessed),
    )(x, params["cw1"], params["b1"], params["w2"], params["b2"])

    return out[:B, :n_vocab]


if __name__ == "__main__":
    # Small shapes consistent with the module.
    n_embed, d_embed, block_size, n_hidden = 32, 8, 4, 64
    B = 8
    d_in = d_embed * block_size

    key = jax.random.PRNGKey(0)
    k_x, k_c, k_w1, k_b1, k_w2, k_b2 = jax.random.split(key, 6)

    X = jax.random.randint(k_x, (B, block_size), 0, n_embed, dtype=jnp.int32)
    C = jax.random.normal(k_c, (n_embed, d_embed), dtype=jnp.float32)
    lim1 = 1.0 / (d_in ** 0.5)
    W1 = jax.random.uniform(k_w1, (n_hidden, d_in), jnp.float32, -lim1, lim1)
    b1 = jax.random.uniform(k_b1, (n_hidden,), jnp.float32, -lim1, lim1)
    lim2 = 1.0 / (n_hidden ** 0.5)
    W2 = jax.random.uniform(k_w2, (n_embed, n_hidden), jnp.float32, -lim2, lim2)
    b2 = jax.random.uniform(k_b2, (n_embed,), jnp.float32, -lim2, lim2)

    # One-time parameter repack (fused gather+L1 weight, padded, bf16 operands).
    params = prepare_params(C, W1, b1, W2, b2, block_size)

    logits = ngram_forward(X, params)
    jax.block_until_ready(logits)

    # Pure-JAX f32 reference (bf16 matmul operands in the kernel -> loose tolerance).
    emb_ref = jnp.take(C, X, axis=0).reshape(B, d_in)
    h_ref = emb_ref @ W1.T + b1
    logits_ref = h_ref @ W2.T + b2

    assert logits.shape == (B, n_embed)
    assert jnp.allclose(logits, logits_ref, atol=5e-2, rtol=5e-2), (
        float(jnp.max(jnp.abs(logits - logits_ref))))

    print("KERNEL_OK")
</pallas_src>

<mosaic_0001>
module attributes {stable_mosaic.version = 11 : i64} {
  func.func @ngram_kernel(%arg0: i32, %arg1: memref<8x4xi32, #tpu.memory_space<vmem>>, %arg2: memref<128x128xbf16, #tpu.memory_space<vmem>>, %arg3: memref<1x128xf32, #tpu.memory_space<vmem>>, %arg4: memref<128x128xbf16, #tpu.memory_space<vmem>>, %arg5: memref<1x128xf32, #tpu.memory_space<vmem>>, %arg6: memref<8x128xf32, #tpu.memory_space<vmem>>) attributes {dimension_semantics = [#tpu.dimension_semantics<parallel>], iteration_bounds = array<i64: 1>, scalar_prefetch = 0 : i64, scratch_operands = 0 : i64, tpu.core_type = #tpu.core_type<tc>, window_params = [{transform_indices = @transform_0, window_bounds = array<i64: 8, 4>}, {pipeline_mode = #tpu.pipeline_mode<synchronous>, transform_indices = @transform_1, window_bounds = array<i64: 128, 128>}, {pipeline_mode = #tpu.pipeline_mode<synchronous>, transform_indices = @transform_2, window_bounds = array<i64: 1, 128>}, {pipeline_mode = #tpu.pipeline_mode<synchronous>, transform_indices = @transform_3, window_bounds = array<i64: 128, 128>}, {pipeline_mode = #tpu.pipeline_mode<synchronous>, transform_indices = @transform_4, window_bounds = array<i64: 1, 128>}, {transform_indices = @transform_5, window_bounds = array<i64: 8, 128>}]} {
    %c0 = arith.constant 0 : index
    %c0_0 = arith.constant 0 : index
    %0 = vector.load %arg1[%c0, %c0_0] : memref<8x4xi32, #tpu.memory_space<vmem>>, vector<8x4xi32>
    %1 = tpu.iota {dimensions = array<i32: 1>} : vector<8x128xi32>
    %c-1_i32 = arith.constant -1 : i32
    %2 = vector.broadcast %c-1_i32 : i32 to vector<8x128xi32>
    %c-2_i32 = arith.constant -2 : i32
    %3 = vector.broadcast %c-2_i32 : i32 to vector<8x128xi32>
    %c0_i32 = arith.constant 0 : i32
    %4 = vector.broadcast %c0_i32 : i32 to vector<8x128xi32>
    %5 = arith.cmpi sge, %1, %4 : vector<8x128xi32>
    %c32_i32 = arith.constant 32 : i32
    %6 = vector.broadcast %c32_i32 : i32 to vector<8x128xi32>
    %7 = arith.cmpi slt, %1, %6 : vector<8x128xi32>
    %8 = arith.andi %5, %7 : vector<8x128xi1>
    %9 = vector.extract_strided_slice %0 {offsets = [0, 0], sizes = [8, 1], strides = [1, 1]} : vector<8x4xi32> to vector<8x1xi32>
    %10 = vector.shape_cast %9 : vector<8x1xi32> to vector<8x1xi32>
    %11 = vector.broadcast %10 : vector<8x1xi32> to vector<8x128xi32>
    %12 = arith.select %8, %11, %2 : vector<8x128xi1>, vector<8x128xi32>
    %c0_i32_1 = arith.constant 0 : i32
    %13 = vector.broadcast %c0_i32_1 : i32 to vector<8x128xi32>
    %14 = arith.subi %1, %13 : vector<8x128xi32>
    %15 = arith.select %8, %14, %3 : vector<8x128xi1>, vector<8x128xi32>
    %c32_i32_2 = arith.constant 32 : i32
    %16 = vector.broadcast %c32_i32_2 : i32 to vector<8x128xi32>
    %17 = arith.cmpi sge, %1, %16 : vector<8x128xi32>
    %c64_i32 = arith.constant 64 : i32
    %18 = vector.broadcast %c64_i32 : i32 to vector<8x128xi32>
    %19 = arith.cmpi slt, %1, %18 : vector<8x128xi32>
    %20 = arith.andi %17, %19 : vector<8x128xi1>
    %21 = vector.extract_strided_slice %0 {offsets = [0, 1], sizes = [8, 1], strides = [1, 1]} : vector<8x4xi32> to vector<8x1xi32>
    %22 = vector.shape_cast %21 : vector<8x1xi32> to vector<8x1xi32>
    %23 = vector.broadcast %22 : vector<8x1xi32> to vector<8x128xi32>
    %24 = arith.select %20, %23, %12 : vector<8x128xi1>, vector<8x128xi32>
    %c32_i32_3 = arith.constant 32 : i32
    %25 = vector.broadcast %c32_i32_3 : i32 to vector<8x128xi32>
    %26 = arith.subi %1, %25 : vector<8x128xi32>
    %27 = arith.select %20, %26, %15 : vector<8x128xi1>, vector<8x128xi32>
    %c64_i32_4 = arith.constant 64 : i32
    %28 = vector.broadcast %c64_i32_4 : i32 to vector<8x128xi32>
    %29 = arith.cmpi sge, %1, %28 : vector<8x128xi32>
    %c96_i32 = arith.constant 96 : i32
    %30 = vector.broadcast %c96_i32 : i32 to vector<8x128xi32>
    %31 = arith.cmpi slt, %1, %30 : vector<8x128xi32>
    %32 = arith.andi %29, %31 : vector<8x128xi1>
    %33 = vector.extract_strided_slice %0 {offsets = [0, 2], sizes = [8, 1], strides = [1, 1]} : vector<8x4xi32> to vector<8x1xi32>
    %34 = vector.shape_cast %33 : vector<8x1xi32> to vector<8x1xi32>
    %35 = vector.broadcast %34 : vector<8x1xi32> to vector<8x128xi32>
    %36 = arith.select %32, %35, %24 : vector<8x128xi1>, vector<8x128xi32>
    %c64_i32_5 = arith.constant 64 : i32
    %37 = vector.broadcast %c64_i32_5 : i32 to vector<8x128xi32>
    %38 = arith.subi %1, %37 : vector<8x128xi32>
    %39 = arith.select %32, %38, %27 : vector<8x128xi1>, vector<8x128xi32>
    %c96_i32_6 = arith.constant 96 : i32
    %40 = vector.broadcast %c96_i32_6 : i32 to vector<8x128xi32>
    %41 = arith.cmpi sge, %1, %40 : vector<8x128xi32>
    %c128_i32 = arith.constant 128 : i32
    %42 = vector.broadcast %c128_i32 : i32 to vector<8x128xi32>
    %43 = arith.cmpi slt, %1, %42 : vector<8x128xi32>
    %44 = arith.andi %41, %43 : vector<8x128xi1>
    %45 = vector.extract_strided_slice %0 {offsets = [0, 3], sizes = [8, 1], strides = [1, 1]} : vector<8x4xi32> to vector<8x1xi32>
    %46 = vector.shape_cast %45 : vector<8x1xi32> to vector<8x1xi32>
    %47 = vector.broadcast %46 : vector<8x1xi32> to vector<8x128xi32>
    %48 = arith.select %44, %47, %36 : vector<8x128xi1>, vector<8x128xi32>
    %c96_i32_7 = arith.constant 96 : i32
    %49 = vector.broadcast %c96_i32_7 : i32 to vector<8x128xi32>
    %50 = arith.subi %1, %49 : vector<8x128xi32>
    %51 = arith.select %44, %50, %39 : vector<8x128xi1>, vector<8x128xi32>
    %52 = arith.cmpi eq, %48, %51 : vector<8x128xi32>
    %53 = arith.extui %52 : vector<8x128xi1> to vector<8x128xi32>
    %54 = arith.sitofp %53 : vector<8x128xi32> to vector<8x128xf32>
    %55 = arith.truncf %54 : vector<8x128xf32> to vector<8x128xbf16>
    %c0_8 = arith.constant 0 : index
    %c0_9 = arith.constant 0 : index
    %56 = vector.load %arg2[%c0_8, %c0_9] : memref<128x128xbf16, #tpu.memory_space<vmem>>, vector<128x128xbf16>
    %cst = arith.constant dense<0.000000e+00> : vector<8x128xf32>
    %57 = tpu.matmul %55, %56, %cst {dimension_numbers = #tpu.dot_dimension_numbers<[1], [0], [0], [1], [0, 0, 1, 1], [], []>} : vector<8x128xbf16>, vector<128x128xbf16>, vector<8x128xf32> -> vector<8x128xf32>
    %c0_10 = arith.constant 0 : index
    %c0_11 = arith.constant 0 : index
    %58 = vector.load %arg3[%c0_10, %c0_11] : memref<1x128xf32, #tpu.memory_space<vmem>>, vector<1x128xf32>
    %59 = vector.broadcast %58 : vector<1x128xf32> to vector<8x128xf32>
    %60 = arith.addf %57, %59 : vector<8x128xf32>
    %61 = arith.truncf %60 : vector<8x128xf32> to vector<8x128xbf16>
    %c0_12 = arith.constant 0 : index
    %c0_13 = arith.constant 0 : index
    %62 = vector.load %arg4[%c0_12, %c0_13] : memref<128x128xbf16, #tpu.memory_space<vmem>>, vector<128x128xbf16>
    %cst_14 = arith.constant dense<0.000000e+00> : vector<8x128xf32>
    %63 = tpu.matmul %61, %62, %cst_14 {dimension_numbers = #tpu.dot_dimension_numbers<[1], [0], [0], [1], [0, 0, 1, 1], [], []>} : vector<8x128xbf16>, vector<128x128xbf16>, vector<8x128xf32> -> vector<8x128xf32>
    %c0_15 = arith.constant 0 : index
    %c0_16 = arith.constant 0 : index
    %64 = vector.load %arg5[%c0_15, %c0_16] : memref<1x128xf32, #tpu.memory_space<vmem>>, vector<1x128xf32>
    %65 = vector.broadcast %64 : vector<1x128xf32> to vector<8x128xf32>
    %66 = arith.addf %63, %65 : vector<8x128xf32>
    %c0_17 = arith.constant 0 : index
    %c0_18 = arith.constant 0 : index
    %67 = vector.load %arg6[%c0_17, %c0_18] : memref<8x128xf32, #tpu.memory_space<vmem>>, vector<8x128xf32>
    tpu.vector_store %arg6[%c0_17, %c0_18], %66 {strides = array<i32>} : memref<8x128xf32, #tpu.memory_space<vmem>>, vector<8x128xf32>,
    return
  }
  func.func @transform_0(%arg0: i32) -> (i32, i32) {
    %c0_i32 = arith.constant 0 : i32
    %c0_i32_0 = arith.constant 0 : i32
    return %arg0, %c0_i32 : i32, i32
  }
  func.func @transform_1(%arg0: i32) -> (i32, i32) {
    %c0_i32 = arith.constant 0 : i32
    %c0_i32_0 = arith.constant 0 : i32
    %c0_i32_1 = arith.constant 0 : i32
    return %c0_i32, %c0_i32_0 : i32, i32
  }
  func.func @transform_2(%arg0: i32) -> (i32, i32) {
    %c0_i32 = arith.constant 0 : i32
    %c0_i32_0 = arith.constant 0 : i32
    %c0_i32_1 = arith.constant 0 : i32
    return %c0_i32, %c0_i32_0 : i32, i32
  }
  func.func @transform_3(%arg0: i32) -> (i32, i32) {
    %c0_i32 = arith.constant 0 : i32
    %c0_i32_0 = arith.constant 0 : i32
    %c0_i32_1 = arith.constant 0 : i32
    return %c0_i32, %c0_i32_0 : i32, i32
  }
  func.func @transform_4(%arg0: i32) -> (i32, i32) {
    %c0_i32 = arith.constant 0 : i32
    %c0_i32_0 = arith.constant 0 : i32
    %c0_i32_1 = arith.constant 0 : i32
    return %c0_i32, %c0_i32_0 : i32, i32
  }
  func.func @transform_5(%arg0: i32) -> (i32, i32) {
    %c0_i32 = arith.constant 0 : i32
    %c0_i32_0 = arith.constant 0 : i32
    return %arg0, %c0_i32 : i32, i32
  }
}

</mosaic_0001>

<llo_original>
// kernel: tpu_custom_call.1
$region0: #{tpu_custom_call.1}
  #allocation0 [shape = 'u32[]', space=smem, size = 0x4, offset = 0x4, fixed_abs, tag = 'smem constant byte address 0x4 - core index']
  #allocation1 [shape = 'u32[144,128]{1,0:T(1,128)}', space=vmem, size = 0x12000, scoped, tag = 'internal scratch']
  %s0 = inlined_call_operand.vmem [shape: s32[8,4], index: 0, kind: input, shape index: {}]
  %s1 = inlined_call_operand.hbm [shape: bf16[128,128], index: 1, kind: input, shape index: {}]
  %s2 = inlined_call_operand.vmem [shape: f32[1,128], index: 2, kind: input, shape index: {}]
  %s3 = inlined_call_operand.hbm [shape: bf16[128,128], index: 3, kind: input, shape index: {}]
  %s4 = inlined_call_operand.vmem [shape: f32[1,128], index: 4, kind: input, shape index: {}]
  %s5 = inlined_call_operand.hbm [shape: f32[8,128], index: 5, kind: output, shape index: {}]
  %s6 = sld [smem:[#allocation0]]
  $region38: #{tpu_custom_call.1} parent=0
    _
  %s8 = ssub.s32 1, %s6
  %s9 = scalar_select 0, %s8, %s6
  $region1: #{tpu_custom_call.1} parent=0
    #allocation2 [shape = 'u8[32768]{0}', space=vmem, size = 0x8000, scoped, tag = 'input window, operand 1, single buffered']
    #allocation3 [shape = 's32[1]{0}', space=sflag, size = 0x4, scoped, tag = 'scoped memory for tpu_custom_call.1']
    #allocation4 [shape = 's32[1]{0}', space=sflag, size = 0x4, scoped, tag = 'scoped memory for tpu_custom_call.1']
    #allocation5 [shape = 'u8[32768]{0}', space=vmem, size = 0x8000, scoped, tag = 'input window, operand 3, single buffered']
    #allocation6 [shape = 's32[1]{0}', space=sflag, size = 0x4, scoped, tag = 'scoped memory for tpu_custom_call.1']
    #allocation7 [shape = 'u8[4096]{0}', space=vmem, size = 0x1000, scoped, tag = 'output window, operand 0, single buffered']
    %10 = vsyncpa [#allocation3], 0
    %11 = vsyncpa [#allocation6], 0
    %12 = vsyncpa [#allocation4], 0
    // Predicated region
    $region2: #{tpu_custom_call.1} parent=1 // pred_check
      _
    $region3: #{tpu_custom_call.1} parent=1 // pred_check_branch
      %14 = sbr.rel (0) target = $region5
    $region4: #{tpu_custom_call.1} parent=1 // pred_region
      _
    $region5: #{tpu_custom_call.1} parent=1 // pred_fallthru
      _
    // Predicated region
    $region6: #{tpu_custom_call.1} parent=1 // pred_check
      _
    $region7: #{tpu_custom_call.1} parent=1 // pred_check_branch
      %16 = sbr.rel (0) target = $region9
    $region8: #{tpu_custom_call.1} parent=1 // pred_region
      %s18 = ssub.s32 1024, 1024
      %19 = vsyncadd [#allocation3], %s18
      %s20 = sshll.u32 [#allocation2], 4
      %s21 = int_to_ptr.vmem [resolvable:$true] %s20
      %26 = dma.hbm_to_vmem [thread:$0]  %s1, 1024, %s21, [#allocation3], 64, 64, 4
    $region9: #{tpu_custom_call.1} parent=1 // pred_fallthru
      _
    // Predicated region
    $region10: #{tpu_custom_call.1} parent=1 // pred_check
      _
    $region11: #{tpu_custom_call.1} parent=1 // pred_check_branch
      %28 = sbr.rel (0) target = $region13
    $region12: #{tpu_custom_call.1} parent=1 // pred_region
      _
    $region13: #{tpu_custom_call.1} parent=1 // pred_fallthru
      _
    // Predicated region
    $region14: #{tpu_custom_call.1} parent=1 // pred_check
      _
    $region15: #{tpu_custom_call.1} parent=1 // pred_check_branch
      %30 = sbr.rel (0) target = $region17
    $region16: #{tpu_custom_call.1} parent=1 // pred_region
      %s32 = ssub.s32 1024, 1024
      %33 = vsyncadd [#allocation6], %s32
      %s34 = sshll.u32 [#allocation5], 4
      %s35 = int_to_ptr.vmem [resolvable:$true] %s34
      %40 = dma.hbm_to_vmem [thread:$0]  %s3, 1024, %s35, [#allocation6], 64, 64, 4
    $region17: #{tpu_custom_call.1} parent=1 // pred_fallthru
      _
    // Predicated region
    $region18: #{tpu_custom_call.1} parent=1 // pred_check
      _
    $region19: #{tpu_custom_call.1} parent=1 // pred_check_branch
      %42 = sbr.rel (0) target = $region21
    $region20: #{tpu_custom_call.1} parent=1 // pred_region
      _
    $region21: #{tpu_custom_call.1} parent=1 // pred_fallthru
      _
    // Predicated region
    $region22: #{tpu_custom_call.1} parent=1 // pred_check
      _
    $region23: #{tpu_custom_call.1} parent=1 // pred_check_branch
      %44 = sbr.rel (0) target = $region25
    $region24: #{tpu_custom_call.1} parent=1 // pred_region
      %45 = dma.done [#allocation3], 1024
    $region25: #{tpu_custom_call.1} parent=1 // pred_fallthru
      _
    // Predicated region
    $region26: #{tpu_custom_call.1} parent=1 // pred_check
      _
    $region27: #{tpu_custom_call.1} parent=1 // pred_check_branch
      %47 = sbr.rel (0) target = $region29
    $region28: #{tpu_custom_call.1} parent=1 // pred_region
      %48 = dma.done [#allocation6], 1024
    $region29: #{tpu_custom_call.1} parent=1 // pred_fallthru
      _
    %v50 = vld [vmem:[%s0] sm:$0xff]
    %v51 = vlaneseq
    %v52 = vand.u32 %v51, 127
    %vm53 = vcmp.ge.s32.totalorder %v52, 0
    %vm54 = vcmp.lt.s32.totalorder %v52, 32
    %vm55 = vmand %vm53, %vm54
    %56 = vset.pattern.permute.xlu0 0
    %57 = vperm.xlu0 %56, %v50
    %v58 = vpop.permute.xlu0 %57
    %v59 = vsel %vm55, %v58, 4294967295
    %v60 = vsel %vm55, %v52, 4294967294
    %vm61 = vcmp.ge.s32.totalorder %v52, 32
    %vm62 = vcmp.lt.s32.totalorder %v52, 64
    %vm63 = vmand %vm61, %vm62
    %64 = vset.pattern.permute.xlu0 1
    %65 = vperm.xlu0 %64, %v50
    %v66 = vpop.permute.xlu0 %65
    %v67 = vsel %vm63, %v66, %v59
    %v68 = vsub.s32 %v52, 32
    %v69 = vsel %vm63, %v68, %v60
    %vm70 = vcmp.ge.s32.totalorder %v52, 64
    %vm71 = vcmp.lt.s32.totalorder %v52, 96
    %vm72 = vmand %vm70, %vm71
    %73 = vset.pattern.permute.xlu0 2
    %74 = vperm.xlu0 %73, %v50
    %v75 = vpop.permute.xlu0 %74
    %v76 = vsel %vm72, %v75, %v67
    %v77 = vsub.s32 %v52, 64
    %v78 = vsel %vm72, %v77, %v69
    %vm79 = vcmp.ge.s32.totalorder %v52, 96
    %vm80 = vcmp.lt.s32.totalorder %v52, 128
    %vm81 = vmand %vm79, %vm80
    %82 = vset.pattern.permute.xlu0 3
    %83 = vperm.xlu0 %82, %v50
    %v84 = vpop.permute.xlu0 %83
    %v85 = vsel %vm81, %v84, %v76
    %v86 = vsub.s32 %v52, 96
    %v87 = vsel %vm81, %v86, %v78
    %vm88 = vcmp.eq.s32.totalorder %v85, %v87
    %v89 = vsel %vm88, 1, 0
    %v90 = vcvt.s32.f32 %v89
    %v91 = vpack.c.bf16 %v90, %v90
    %v92 = vld [vmem:[#allocation2] sm:$0xf]
    %v93 = vld [vmem:[#allocation2 + $0x4] sm:$0xf]
    %v94 = vld [vmem:[#allocation2 + $0x8] sm:$0xf]
    %v95 = vld [vmem:[#allocation2 + $0xc] sm:$0xf]
    %v96 = vld [vmem:[#allocation2 + $0x10] sm:$0xf]
    %v97 = vld [vmem:[#allocation2 + $0x14] sm:$0xf]
    %v98 = vld [vmem:[#allocation2 + $0x18] sm:$0xf]
    %v99 = vld [vmem:[#allocation2 + $0x1c] sm:$0xf]
    %v100 = vld [vmem:[#allocation2 + $0x20] sm:$0xf]
    %v101 = vld [vmem:[#allocation2 + $0x24] sm:$0xf]
    %v102 = vld [vmem:[#allocation2 + $0x28] sm:$0xf]
    %v103 = vld [vmem:[#allocation2 + $0x2c] sm:$0xf]
    %v104 = vld [vmem:[#allocation2 + $0x30] sm:$0xf]
    %v105 = vld [vmem:[#allocation2 + $0x34] sm:$0xf]
    %v106 = vld [vmem:[#allocation2 + $0x38] sm:$0xf]
    %v107 = vld [vmem:[#allocation2 + $0x3c] sm:$0xf]
    %v108 = vld [vmem:[%s2] sm:$0x1]
    %v110 = vlaneseq
    %v111 = vshrl.u32 %v110, 7
    %v112 = vsub.s32 0, %v111
    %v113 = vrot.slane %v108, %v112
    %v131 = vunpack.c.l.b16 %v92
    %v132 = vunpack.c.l.b16 %v93
    %v133 = vunpack.c.l.b16 %v94
    %v134 = vunpack.c.l.b16 %v95
    %v135 = vunpack.c.l.b16 %v96
    %v136 = vunpack.c.l.b16 %v97
    %v137 = vunpack.c.l.b16 %v98
    %v138 = vunpack.c.l.b16 %v99
    %v139 = vunpack.c.l.b16 %v100
    %v140 = vunpack.c.l.b16 %v101
    %v141 = vunpack.c.l.b16 %v102
    %v142 = vunpack.c.l.b16 %v103
    %v143 = vunpack.c.l.b16 %v104
    %v144 = vunpack.c.l.b16 %v105
    %v145 = vunpack.c.l.b16 %v106
    %v146 = vunpack.c.l.b16 %v107
    %v147 = vpack.c.b16 %v132, %v131
    %v148 = vpack.c.b16 %v134, %v133
    %v149 = vpack.c.b16 %v136, %v135
    %v150 = vpack.c.b16 %v138, %v137
    %v151 = vpack.c.b16 %v140, %v139
    %v152 = vpack.c.b16 %v142, %v141
    %v153 = vpack.c.b16 %v144, %v143
    %v154 = vpack.c.b16 %v146, %v145
    %163 = vmatprep.subr.bf16.mxu0 0
    %164 = vmatpush1.bf16.msra.mxu0 %v154
    %165 = vmatprep.subr.bf16.mxu0 0
    %166 = vmatpush1.bf16.msra.mxu0 %v153
    %167 = vmatprep.subr.bf16.mxu0 0
    %168 = vmatpush1.bf16.msra.mxu0 %v152
    %169 = vmatprep.subr.bf16.mxu0 0
    %170 = vmatpush1.bf16.msra.mxu0 %v151
    %171 = vmatprep.subr.bf16.mxu0 0
    %172 = vmatpush1.bf16.msra.mxu0 %v150
    %173 = vmatprep.subr.bf16.mxu0 0
    %174 = vmatpush1.bf16.msra.mxu0 %v149
    %175 = vmatprep.subr.bf16.mxu0 0
    %176 = vmatpush1.bf16.msra.mxu0 %v148
    %177 = vmatprep.subr.bf16.mxu0 0
    %178 = vmatpush1.bf16.msra.mxu0 %v147
    %179 = vmatprep.subr.bf16.mxu0 0
    %180 = vmatpush2.bf16.msra.mxu0 0
    %181 = vmatprep.subr.bf16.mxu0 0
    %182 = vmatpush2.bf16.msra.mxu0 0
    %183 = vmatprep.subr.bf16.mxu0 0
    %184 = vmatpush2.bf16.msra.mxu0 0
    %185 = vmatprep.subr.bf16.mxu0 0
    %186 = vmatpush2.bf16.msra.mxu0 0
    %187 = vmatprep.subr.bf16.mxu0 0
    %188 = vmatpush2.bf16.msra.mxu0 0
    %189 = vmatprep.subr.bf16.mxu0 0
    %190 = vmatpush2.bf16.msra.mxu0 0
    %191 = vmatprep.subr.bf16.mxu0 0
    %192 = vmatpush2.bf16.msra.mxu0 0
    %193 = vmatprep.subr.bf16.mxu0 0
    %194 = vmatpush2.bf16.msra.mxu0 0
    %195 = vmatprep.mubr.bf16.mxu0 0
    %196 = vmatmul.mubr.bf16.gmra.mxu0 %v91
    %v197 = vpop.f32.mrf.mxu0
    %v198 = vadd.f32 %v113, %v197
    %v199 = vpop.f32.mrf.mxu0
    %v200 = vpop.f32.mrf.mxu0
    %v201 = vpop.f32.mrf.mxu0
    %202 = vdwg.mxu0
    %v203 = vpack.c.bf16 %v198, %v198
    %v204 = vld [vmem:[#allocation5] sm:$0xf]
    %v205 = vld [vmem:[#allocation5 + $0x4] sm:$0xf]
    %v206 = vld [vmem:[#allocation5 + $0x8] sm:$0xf]
    %v207 = vld [vmem:[#allocation5 + $0xc] sm:$0xf]
    %v208 = vld [vmem:[#allocation5 + $0x10] sm:$0xf]
    %v209 = vld [vmem:[#allocation5 + $0x14] sm:$0xf]
    %v210 = vld [vmem:[#allocation5 + $0x18] sm:$0xf]
    %v211 = vld [vmem:[#allocation5 + $0x1c] sm:$0xf]
    %v212 = vld [vmem:[#allocation5 + $0x20] sm:$0xf]
    %v213 = vld [vmem:[#allocation5 + $0x24] sm:$0xf]
    %v214 = vld [vmem:[#allocation5 + $0x28] sm:$0xf]
    %v215 = vld [vmem:[#allocation5 + $0x2c] sm:$0xf]
    %v216 = vld [vmem:[#allocation5 + $0x30] sm:$0xf]
    %v217 = vld [vmem:[#allocation5 + $0x34] sm:$0xf]
    %v218 = vld [vmem:[#allocation5 + $0x38] sm:$0xf]
    %v219 = vld [vmem:[#allocation5 + $0x3c] sm:$0xf]
    %v220 = vld [vmem:[%s4] sm:$0x1]
    %v222 = vlaneseq
    %v223 = vshrl.u32 %v222, 7
    %v224 = vsub.s32 0, %v223
    %v225 = vrot.slane %v220, %v224
    %v243 = vunpack.c.l.b16 %v204
    %v244 = vunpack.c.l.b16 %v205
    %v245 = vunpack.c.l.b16 %v206
    %v246 = vunpack.c.l.b16 %v207
    %v247 = vunpack.c.l.b16 %v208
    %v248 = vunpack.c.l.b16 %v209
    %v249 = vunpack.c.l.b16 %v210
    %v250 = vunpack.c.l.b16 %v211
    %v251 = vunpack.c.l.b16 %v212
    %v252 = vunpack.c.l.b16 %v213
    %v253 = vunpack.c.l.b16 %v214
    %v254 = vunpack.c.l.b16 %v215
    %v255 = vunpack.c.l.b16 %v216
    %v256 = vunpack.c.l.b16 %v217
    %v257 = vunpack.c.l.b16 %v218
    %v258 = vunpack.c.l.b16 %v219
    %v259 = vpack.c.b16 %v244, %v243
    %v260 = vpack.c.b16 %v246, %v245
    %v261 = vpack.c.b16 %v248, %v247
    %v262 = vpack.c.b16 %v250, %v249
    %v263 = vpack.c.b16 %v252, %v251
    %v264 = vpack.c.b16 %v254, %v253
    %v265 = vpack.c.b16 %v256, %v255
    %v266 = vpack.c.b16 %v258, %v257
    %275 = vmatprep.subr.bf16.mxu0 0
    %276 = vmatpush1.bf16.msra.mxu0 %v266
    %277 = vmatprep.subr.bf16.mxu0 0
    %278 = vmatpush1.bf16.msra.mxu0 %v265
    %279 = vmatprep.subr.bf16.mxu0 0
    %280 = vmatpush1.bf16.msra.mxu0 %v264
    %281 = vmatprep.subr.bf16.mxu0 0
    %282 = vmatpush1.bf16.msra.mxu0 %v263
    %283 = vmatprep.subr.bf16.mxu0 0
    %284 = vmatpush1.bf16.msra.mxu0 %v262
    %285 = vmatprep.subr.bf16.mxu0 0
    %286 = vmatpush1.bf16.msra.mxu0 %v261
    %287 = vmatprep.subr.bf16.mxu0 0
    %288 = vmatpush1.bf16.msra.mxu0 %v260
    %289 = vmatprep.subr.bf16.mxu0 0
    %290 = vmatpush1.bf16.msra.mxu0 %v259
    %291 = vmatprep.subr.bf16.mxu0 0
    %292 = vmatpush2.bf16.msra.mxu0 0
    %293 = vmatprep.subr.bf16.mxu0 0
    %294 = vmatpush2.bf16.msra.mxu0 0
    %295 = vmatprep.subr.bf16.mxu0 0
    %296 = vmatpush2.bf16.msra.mxu0 0
    %297 = vmatprep.subr.bf16.mxu0 0
    %298 = vmatpush2.bf16.msra.mxu0 0
    %299 = vmatprep.subr.bf16.mxu0 0
    %300 = vmatpush2.bf16.msra.mxu0 0
    %301 = vmatprep.subr.bf16.mxu0 0
    %302 = vmatpush2.bf16.msra.mxu0 0
    %303 = vmatprep.subr.bf16.mxu0 0
    %304 = vmatpush2.bf16.msra.mxu0 0
    %305 = vmatprep.subr.bf16.mxu0 0
    %306 = vmatpush2.bf16.msra.mxu0 0
    %307 = vmatprep.mubr.bf16.mxu0 0
    %308 = vmatmul.mubr.bf16.gmra.mxu0 %v203
    %v309 = vpop.f32.mrf.mxu0
    %v310 = vadd.f32 %v225, %v309
    %v311 = vpop.f32.mrf.mxu0
    %v312 = vpop.f32.mrf.mxu0
    %v313 = vpop.f32.mrf.mxu0
    %314 = vdwg.mxu0
    %315 = vst [vmem:[#allocation7] sm:$0xff] %v310
    // Predicated region
    $region30: #{tpu_custom_call.1} parent=1 // pred_check
      _
    $region31: #{tpu_custom_call.1} parent=1 // pred_check_branch
      %317 = sbr.rel (0) target = $region33
    $region32: #{tpu_custom_call.1} parent=1 // pred_region
      %s319 = ssub.s32 128, 128
      %320 = vsyncadd [#allocation4], %s319
      %s322 = sshll.u32 [#allocation7], 4
      %s323 = int_to_ptr.vmem [resolvable:$true] %s322
      %325 = dma.vmem_to_hbm [thread:$0]  %s323, 128, %s5, [#allocation4]
    $region33: #{tpu_custom_call.1} parent=1 // pred_fallthru
      _
    // Predicated region
    $region34: #{tpu_custom_call.1} parent=1 // pred_check
      _
    $region35: #{tpu_custom_call.1} parent=1 // pred_check_branch
      %327 = sbr.rel (0) target = $region37
    $region36: #{tpu_custom_call.1} parent=1 // pred_region
      %328 = dma.done [#allocation4], 128
    $region37: #{tpu_custom_call.1} parent=1 // pred_fallthru
      _
    %329 = vsyncpa [#allocation3], 1
    %330 = vsyncpa [#allocation6], 1
    %331 = vsyncpa [#allocation4], 1

</llo_original>
